<compile_context>
chip_gen: v7x
topology: tpu7x:2x2x1
jax: 0.10.0
libtpu: 0.0.40
codegen_flags: <defaults>
</compile_context>

<pallas_src>
import functools

import jax
import jax.numpy as jnp
from jax import lax
from jax.experimental import pallas as pl
from jax.experimental.pallas import tpu as pltpu

DICE_A = 0.1      # the `a` parameter from Dice.__init__
BN_EPS = 1e-5     # nn.BatchNorm1d default eps

# Fused blend through a single tanh (EUP):
#   prob = sigmoid(z) = 0.5 * (1 + tanh(z / 2))
#   out  = x * (a + (1 - a) * prob) = x * (C0 + C1 * tanh(z / 2))
_C0 = DICE_A + 0.5 * (1.0 - DICE_A)
_C1 = 0.5 * (1.0 - DICE_A)

_LANE = 128
_SUBLANE = 8
_MAX_TILE_D = 32768                 # lane-dense tiles are cheap when B is small
_TWO_BLOCK_BYTES = 4 * 1024 * 1024  # above this, insist on >=2 grid blocks (v7x: 2 TCs)
_FP32_TEMP_BYTES = 3 * 4            # ~3 live fp32 compute slabs per element


def _vmem_capacity_bytes():
    """Physical VMEM per TensorCore, with a conservative fallback."""
    try:
        info = pltpu.get_tpu_info()
        for name in ("vmem_capacity_bytes", "vmem_size_bytes", "vmem_bytes"):
            cap = getattr(info, name, None)
            if cap:
                return int(cap)
    except Exception:
        pass
    return 64 * 1024 * 1024         # v7x per-TC size (most conservative)


_VMEM_CAP = _vmem_capacity_bytes()
# Tile-sizing budget: double-buffered pipeline slabs + fp32 temporaries must
# fit here.  ~64 MiB on 128-MiB chips (v5e/v6e), ~32 MiB on 64-MiB v7x.
_VMEM_BUDGET = min(_VMEM_CAP // 2, 64 * 1024 * 1024)
# Scoped VMEM limit handed to the compiler (extra headroom over the budget).
_VMEM_LIMIT = int(min(_VMEM_BUDGET + 32 * 1024 * 1024, _VMEM_CAP * 7 // 8))


def _round_up(x, m):
    return (x + m - 1) // m * m


def _compiler_params(dim_sem):
    return pltpu.CompilerParams(dimension_semantics=dim_sem,
                                vmem_limit_bytes=_VMEM_LIMIT)


def _cost(batch, feat, itemsize, *, rw_passes, trans_per_elem):
    n = batch * feat
    return pl.CostEstimate(flops=8 * n,
                           transcendentals=int(trans_per_elem * n),
                           bytes_accessed=int(rw_passes * n * itemsize))


# ----------------------------------------------------------------------------
# Single-pass kernel: full batch column per feature tile (exact BN stats).
# ----------------------------------------------------------------------------
def _dice_single_kernel(x_ref, o_ref):
    # x_ref: (B, tile_d) tile in VMEM; BN statistics reduce over axis 0.
    x = x_ref[...].astype(jnp.float32)

    mean = jnp.mean(x, axis=0, keepdims=True)            # (1, tile_d)
    d = x - mean
    var = jnp.mean(d * d, axis=0, keepdims=True)         # biased variance
    half_scale = 0.5 * lax.rsqrt(var + BN_EPS)           # EUP rsqrt

    t = jnp.tanh(d * half_scale)                         # 1 transcendental/elem
    o_ref[...] = (x * (_C0 + _C1 * t)).astype(o_ref.dtype)


def _single_pass_tile_d(batch, feat, itemsize):
    feat_pad = _round_up(feat, _LANE)
    # Per-feature-column VMEM cost: in + out, double-buffered pipeline slabs,
    # plus ~3 live fp32 compute temporaries (inputs are upcast in-kernel).
    bytes_per_col = batch * (4 * itemsize + _FP32_TEMP_BYTES)
    cols = (_VMEM_BUDGET // max(bytes_per_col, 1)) // _LANE * _LANE
    tile_d = max(_LANE, min(cols, _MAX_TILE_D, feat_pad))

    # v7x megacore: keep >= 2 blocks on the parallel axis for non-trivial
    # inputs so both TensorCores get work (harmless on 1-TC chips).
    if (tile_d >= feat_pad and feat >= 2 * _LANE
            and batch * feat * itemsize >= _TWO_BLOCK_BYTES):
        tile_d = max(_LANE, _round_up(pl.cdiv(feat, 2), _LANE))

    if tile_d >= feat_pad:
        return feat, 1                    # one full-array block (tiny inputs)

    # Prefer an exact multiple-of-128 divisor of D only if it keeps at least
    # half the candidate tile width; otherwise keep the big tile and let the
    # last block be a padded tail.  The tail needs no masking: BN reduces over
    # B, so per-feature columns are fully independent and padded columns are
    # simply dropped on writeback.
    if feat % _LANE == 0:
        td = tile_d
        lo = max(_LANE, tile_d // 2)
        while td >= lo and feat % td != 0:
            td -= _LANE
        if td >= lo and feat % td == 0:
            tile_d = td
    return tile_d, pl.cdiv(feat, tile_d)


def _dice_single_pass(embs, tile_d, grid_d):
    batch, feat = embs.shape
    itemsize = jnp.dtype(embs.dtype).itemsize
    return pl.pallas_call(
        _dice_single_kernel,
        out_shape=jax.ShapeDtypeStruct((batch, feat), embs.dtype),
        grid_spec=pltpu.PrefetchScalarGridSpec(
            num_scalar_prefetch=0,
            grid=(grid_d,),
            in_specs=[pl.BlockSpec((batch, tile_d), lambda j: (0, j))],
            out_specs=pl.BlockSpec((batch, tile_d), lambda j: (0, j)),
        ),
        compiler_params=_compiler_params(("parallel",)),
        cost_estimate=_cost(batch, feat, itemsize, rw_passes=2, trans_per_elem=1),
    )(embs)


# ----------------------------------------------------------------------------
# Two-pass path for very large batches: (1) per-feature sum / sum-of-squares
# reduction tiled over B, (2) normalize + tanh-blend with the BN epilogue
# fused into the apply kernel (stats passed as one stacked (2, D) array).
# ----------------------------------------------------------------------------
def _dice_stats_kernel(x_ref, stat_ref, *, tile_b, batch):
    bi = pl.program_id(1)                 # batch-tile index (reduction axis)

    @pl.when(bi == 0)
    def _():
        stat_ref[...] = jnp.zeros_like(stat_ref)

    x = x_ref[...].astype(jnp.float32)
    if batch % tile_b != 0:
        # Mask padded tail rows so they do not pollute the statistics.
        row = lax.broadcasted_iota(jnp.int32, x.shape, 0) + bi * tile_b
        x = jnp.where(row < batch, x, 0.0)

    s = jnp.sum(x, axis=0, keepdims=True)
    sq = jnp.sum(x * x, axis=0, keepdims=True)
    stat_ref[...] += jnp.concatenate([s, sq], axis=0)     # row 0: sum, row 1: sum^2


def _dice_apply_kernel(x_ref, stat_ref, o_ref, *, batch):
    x = x_ref[...].astype(jnp.float32)
    stats = stat_ref[...]                                  # (2, tile_d)
    inv_n = 1.0 / batch
    mean = stats[0:1, :] * inv_n
    var = jnp.maximum(stats[1:2, :] * inv_n - mean * mean, 0.0)   # biased variance
    half_scale = 0.5 * lax.rsqrt(var + BN_EPS)             # cheap per-tile EUP recompute
    t = jnp.tanh((x - mean) * half_scale)
    o_ref[...] = (x * (_C0 + _C1 * t)).astype(o_ref.dtype)


def _dice_two_pass(embs, tile_b, tile_d):
    batch, feat = embs.shape
    itemsize = jnp.dtype(embs.dtype).itemsize
    grid_b = pl.cdiv(batch, tile_b)
    grid_d = pl.cdiv(feat, tile_d)

    stats_kernel = functools.partial(_dice_stats_kernel, tile_b=tile_b, batch=batch)
    stats = pl.pallas_call(
        stats_kernel,
        out_shape=jax.ShapeDtypeStruct((2, feat), jnp.float32),
        grid_spec=pltpu.PrefetchScalarGridSpec(
            num_scalar_prefetch=0,
            grid=(grid_d, grid_b),                         # reduction axis last
            in_specs=[pl.BlockSpec((tile_b, tile_d), lambda j, b: (b, j))],
            out_specs=pl.BlockSpec((2, tile_d), lambda j, b: (0, j)),
        ),
        compiler_params=_compiler_params(("parallel", "arbitrary")),
        cost_estimate=_cost(batch, feat, itemsize, rw_passes=1, trans_per_elem=0),
    )(embs)

    apply_kernel = functools.partial(_dice_apply_kernel, batch=batch)
    return pl.pallas_call(
        apply_kernel,
        out_shape=jax.ShapeDtypeStruct((batch, feat), embs.dtype),
        grid_spec=pltpu.PrefetchScalarGridSpec(
            num_scalar_prefetch=0,
            # Batch innermost: the (2, tile_d) stats block index is constant
            # across the inner loop, so it stays resident in VMEM and is only
            # re-DMA'd when the feature tile changes.
            grid=(grid_d, grid_b),
            in_specs=[pl.BlockSpec((tile_b, tile_d), lambda j, b: (b, j)),
                      pl.BlockSpec((2, tile_d), lambda j, b: (0, j))],
            out_specs=pl.BlockSpec((tile_b, tile_d), lambda j, b: (b, j)),
        ),
        compiler_params=_compiler_params(("parallel", "parallel")),
        cost_estimate=_cost(batch, feat, itemsize, rw_passes=2, trans_per_elem=1),
    )(embs, stats)


# ----------------------------------------------------------------------------
# Public entry point.
# ----------------------------------------------------------------------------
def dice(embs, *, two_pass=None, tile_b=None, tile_d=None):
    """Dice activation: sigmoid(BatchNorm1d(embs)) gated blend of embs."""
    batch, feat = embs.shape
    itemsize = jnp.dtype(embs.dtype).itemsize
    # Per-element VMEM cost: double-buffered in+out pipeline slabs + ~3 live
    # fp32 compute temporaries (bf16 inputs still upcast to fp32 in-kernel).
    bytes_per_elem = 4 * itemsize + _FP32_TEMP_BYTES

    if two_pass is None:
        # Single pass keeps the full batch column resident: it needs at least
        # one 128-lane-wide tile inside the budget.  The two-pass path costs
        # 1.5x HBM traffic, so it is delayed as long as possible.
        two_pass = batch * bytes_per_elem * _LANE > _VMEM_BUDGET

    if not two_pass:
        if tile_d is None:
            td, grid_d = _single_pass_tile_d(batch, feat, itemsize)
        else:
            td, grid_d = tile_d, pl.cdiv(feat, tile_d)
        return _dice_single_pass(embs, td, grid_d)

    # Two-pass defaults.
    if tile_d is None:
        tile_d = min(1024, _round_up(feat, _LANE))
        if feat <= tile_d:
            tile_d = feat
    if tile_b is None:
        bytes_per_row = tile_d * bytes_per_elem
        tb = max(_SUBLANE,
                 (_VMEM_BUDGET // max(bytes_per_row, 1)) // _SUBLANE * _SUBLANE)
        tile_b = min(8192, tb, _round_up(batch, _SUBLANE))
        if batch <= tile_b:
            tile_b = batch
    return _dice_two_pass(embs, tile_b, tile_d)


def dice_ref(embs):
    # Pure-JAX reference (sigmoid form, matches PyTorch exactly).
    x = embs.astype(jnp.float32)
    mean = jnp.mean(x, axis=0, keepdims=True)
    var = jnp.mean((x - mean) ** 2, axis=0, keepdims=True)
    x_hat = (x - mean) / jnp.sqrt(var + BN_EPS)
    prob = jax.nn.sigmoid(x_hat)
    return (prob * x + (1.0 - prob) * DICE_A * x).astype(embs.dtype)


if __name__ == "__main__":
    key = jax.random.PRNGKey(0)

    # Small shape consistent with Dice inside DIEN's dense layers.
    B, D = 8, 256
    embs = jax.random.normal(key, (B, D), dtype=jnp.float32)
    out = jax.block_until_ready(dice(embs))          # single-pass, 1-block path
    ref = dice_ref(embs)
    assert out.shape == (B, D)
    assert jnp.allclose(out, ref, atol=1e-5, rtol=1e-5)

    # Multi-tile single-pass with a padded D tail (no masking needed: the BN
    # reduction is over B, per-feature columns are independent).
    B1, D1 = 8, 640
    embs1 = jax.random.normal(jax.random.PRNGKey(2), (B1, D1), dtype=jnp.float32)
    out1 = jax.block_until_ready(dice(embs1, tile_d=256))
    assert jnp.allclose(out1, dice_ref(embs1), atol=1e-5, rtol=1e-5)

    # Exercise the large-batch two-pass path (B-tiled reduction with a masked
    # tail: B=20 with tile_b=16, D tiled by 128, BN epilogue fused into apply).
    B2, D2 = 20, 384
    embs2 = jax.random.normal(jax.random.PRNGKey(1), (B2, D2), dtype=jnp.float32)
    out2 = jax.block_until_ready(dice(embs2, two_pass=True, tile_b=16, tile_d=128))
    assert out2.shape == (B2, D2)
    assert jnp.allclose(out2, dice_ref(embs2), atol=1e-4, rtol=1e-4)

    print("KERNEL_OK")
</pallas_src>

<mosaic_0001>
module attributes {stable_mosaic.version = 11 : i64} {
  func.func @_dice_single_kernel(%arg0: i32, %arg1: memref<8x256xf32, #tpu.memory_space<vmem>>, %arg2: memref<8x256xf32, #tpu.memory_space<vmem>>) attributes {dimension_semantics = [#tpu.dimension_semantics<parallel>], iteration_bounds = array<i64: 1>, scalar_prefetch = 0 : i64, scratch_operands = 0 : i64, tpu.core_type = #tpu.core_type<tc>, window_params = [{transform_indices = @transform_0, window_bounds = array<i64: 8, 256>}, {transform_indices = @transform_1, window_bounds = array<i64: 8, 256>}]} {
    %c0 = arith.constant 0 : index
    %c0_0 = arith.constant 0 : index
    %0 = vector.load %arg1[%c0, %c0_0] : memref<8x256xf32, #tpu.memory_space<vmem>>, vector<8x256xf32>
    %cst = arith.constant dense<0.000000e+00> : vector<256xf32>
    %1 = vector.multi_reduction <add>, %0, %cst [0] : vector<8x256xf32> to vector<256xf32>
    %2 = vector.shape_cast %1 : vector<256xf32> to vector<1x256xf32>
    %cst_1 = arith.constant 8.000000e+00 : f32
    %3 = vector.broadcast %cst_1 : f32 to vector<1x256xf32>
    %4 = arith.divf %2, %3 : vector<1x256xf32>
    %5 = vector.broadcast %4 : vector<1x256xf32> to vector<8x256xf32>
    %6 = arith.subf %0, %5 : vector<8x256xf32>
    %7 = arith.mulf %6, %6 : vector<8x256xf32>
    %cst_2 = arith.constant dense<0.000000e+00> : vector<256xf32>
    %8 = vector.multi_reduction <add>, %7, %cst_2 [0] : vector<8x256xf32> to vector<256xf32>
    %9 = vector.shape_cast %8 : vector<256xf32> to vector<1x256xf32>
    %cst_3 = arith.constant 8.000000e+00 : f32
    %10 = vector.broadcast %cst_3 : f32 to vector<1x256xf32>
    %11 = arith.divf %9, %10 : vector<1x256xf32>
    %cst_4 = arith.constant 9.99999974E-6 : f32
    %12 = vector.broadcast %cst_4 : f32 to vector<1x256xf32>
    %13 = arith.addf %11, %12 : vector<1x256xf32>
    %14 = math.rsqrt %13 : vector<1x256xf32>
    %cst_5 = arith.constant 5.000000e-01 : f32
    %15 = vector.broadcast %cst_5 : f32 to vector<1x256xf32>
    %16 = arith.mulf %15, %14 : vector<1x256xf32>
    %17 = vector.broadcast %16 : vector<1x256xf32> to vector<8x256xf32>
    %18 = arith.mulf %6, %17 : vector<8x256xf32>
    %19 = math.tanh %18 : vector<8x256xf32>
    %cst_6 = arith.constant 4.500000e-01 : f32
    %20 = vector.broadcast %cst_6 : f32 to vector<8x256xf32>
    %21 = arith.mulf %20, %19 : vector<8x256xf32>
    %cst_7 = arith.constant 5.500000e-01 : f32
    %22 = vector.broadcast %cst_7 : f32 to vector<8x256xf32>
    %23 = arith.addf %22, %21 : vector<8x256xf32>
    %24 = arith.mulf %0, %23 : vector<8x256xf32>
    %c0_8 = arith.constant 0 : index
    %c0_9 = arith.constant 0 : index
    %25 = vector.load %arg2[%c0_8, %c0_9] : memref<8x256xf32, #tpu.memory_space<vmem>>, vector<8x256xf32>
    tpu.vector_store %arg2[%c0_8, %c0_9], %24 {strides = array<i32>} : memref<8x256xf32, #tpu.memory_space<vmem>>, vector<8x256xf32>,
    return
  }
  func.func @transform_0(%arg0: i32) -> (i32, i32) {
    %c0_i32 = arith.constant 0 : i32
    %c0_i32_0 = arith.constant 0 : i32
    return %c0_i32, %arg0 : i32, i32
  }
  func.func @transform_1(%arg0: i32) -> (i32, i32) {
    %c0_i32 = arith.constant 0 : i32
    %c0_i32_0 = arith.constant 0 : i32
    return %c0_i32, %arg0 : i32, i32
  }
}

</mosaic_0001>

<llo_original>
// kernel: tpu_custom_call.1
$region0: #{tpu_custom_call.1}
  #allocation0 [shape = 'u32[]', space=smem, size = 0x4, offset = 0x4, fixed_abs, tag = 'smem constant byte address 0x4 - core index']
  #allocation1 [shape = 'u32[144,128]{1,0:T(1,128)}', space=vmem, size = 0x12000, scoped, tag = 'internal scratch']
  %s0 = inlined_call_operand.hbm [shape: f32[8,256], index: 0, kind: input, shape index: {}]
  %s1 = inlined_call_operand.hbm [shape: f32[8,256], index: 1, kind: output, shape index: {}]
  %s2 = sld [smem:[#allocation0]]
  $region18: #{tpu_custom_call.1} parent=0
    _
  %s4 = ssub.s32 1, %s2
  %s5 = scalar_select 0, %s4, %s2
  $region1: #{tpu_custom_call.1} parent=0
    #allocation2 [shape = 'u8[8192]{0}', space=vmem, size = 0x2000, scoped, tag = 'input window, operand 0, single buffered']
    #allocation3 [shape = 's32[1]{0}', space=sflag, size = 0x4, scoped, tag = 'scoped memory for tpu_custom_call.1']
    #allocation4 [shape = 's32[1]{0}', space=sflag, size = 0x4, scoped, tag = 'scoped memory for tpu_custom_call.1']
    #allocation5 [shape = 'u8[8192]{0}', space=vmem, size = 0x2000, scoped, tag = 'output window, operand 0, single buffered']
    %6 = vsyncpa [#allocation3], 0
    %7 = vsyncpa [#allocation4], 0
    // Predicated region
    $region2: #{tpu_custom_call.1} parent=1 // pred_check
      _
    $region3: #{tpu_custom_call.1} parent=1 // pred_check_branch
      %9 = sbr.rel (0) target = $region5
    $region4: #{tpu_custom_call.1} parent=1 // pred_region
      %s11 = ssub.s32 256, 256
      %12 = vsyncadd [#allocation3], %s11
      %s14 = sshll.u32 [#allocation2], 4
      %s15 = int_to_ptr.vmem [resolvable:$true] %s14
      %17 = dma.hbm_to_vmem [thread:$0]  %s0, 256, %s15, [#allocation3]
    $region5: #{tpu_custom_call.1} parent=1 // pred_fallthru
      _
    // Predicated region
    $region6: #{tpu_custom_call.1} parent=1 // pred_check
      _
    $region7: #{tpu_custom_call.1} parent=1 // pred_check_branch
      %19 = sbr.rel (0) target = $region9
    $region8: #{tpu_custom_call.1} parent=1 // pred_region
      %20 = dma.done [#allocation3], 256
    $region9: #{tpu_custom_call.1} parent=1 // pred_fallthru
      _
    %v21 = vld [vmem:[#allocation2] sm:$0xff]
    %v22 = vld [vmem:[#allocation2 + $0x8] sm:$0xff]
    %v23 = vrot.slane %v21, 4
    %v24 = vadd.f32 %v21, %v23
    %v25 = vrot.slane %v24, 2
    %v26 = vadd.f32 %v24, %v25
    %v27 = vrot.slane %v26, 1
    %v28 = vadd.f32 %v26, %v27
    %v29 = vrot.slane %v22, 4
    %v30 = vadd.f32 %v22, %v29
    %v31 = vrot.slane %v30, 2
    %v32 = vadd.f32 %v30, %v31
    %v33 = vrot.slane %v32, 1
    %v34 = vadd.f32 %v32, %v33
    %v35 = vrcp.pop 8.0
    %v36 = vmul.f32 %v28, %v35
    %v37 = vmul.f32 %v34, %v35
    %v38 = vsub.f32 %v21, %v36
    %v39 = vsub.f32 %v22, %v37
    %v40 = vmul.f32 %v38, %v38
    %v41 = vmul.f32 %v39, %v39
    %v42 = vrot.slane %v40, 4
    %v43 = vadd.f32 %v40, %v42
    %v44 = vrot.slane %v43, 2
    %v45 = vadd.f32 %v43, %v44
    %v46 = vrot.slane %v45, 1
    %v47 = vadd.f32 %v45, %v46
    %v48 = vrot.slane %v41, 4
    %v49 = vadd.f32 %v41, %v48
    %v50 = vrot.slane %v49, 2
    %v51 = vadd.f32 %v49, %v50
    %v52 = vrot.slane %v51, 1
    %v53 = vadd.f32 %v51, %v52
    %v54 = vmul.f32 %v47, %v35
    %v55 = vmul.f32 %v53, %v35
    %v56 = vadd.f32 %v54, 1e-05
    %v57 = vadd.f32 %v55, 1e-05
    %v58 = vrsqrt.pop %v56
    %v59 = vrsqrt.pop %v57
    %v60 = vmul.f32 %v58, 0.5
    %v61 = vmul.f32 %v59, 0.5
    %v62 = vmul.f32 %v38, %v60
    %v63 = vmul.f32 %v39, %v61
    %v64 = vtanh.pop %v62
    %v65 = vtanh.pop %v63
    %v66 = vmul.f32 %v64, 0.45
    %v67 = vmul.f32 %v65, 0.45
    %v68 = vadd.f32 %v66, 0.55
    %v69 = vadd.f32 %v67, 0.55
    %v70 = vmul.f32 %v21, %v68
    %v71 = vmul.f32 %v22, %v69
    %72 = vst [vmem:[#allocation5] sm:$0xff] %v70
    %73 = vst [vmem:[#allocation5 + $0x8] sm:$0xff] %v71
    // Predicated region
    $region10: #{tpu_custom_call.1} parent=1 // pred_check
      _
    $region11: #{tpu_custom_call.1} parent=1 // pred_check_branch
      %75 = sbr.rel (0) target = $region13
    $region12: #{tpu_custom_call.1} parent=1 // pred_region
      %s77 = ssub.s32 256, 256
      %78 = vsyncadd [#allocation4], %s77
      %s80 = sshll.u32 [#allocation5], 4
      %s81 = int_to_ptr.vmem [resolvable:$true] %s80
      %83 = dma.vmem_to_hbm [thread:$0]  %s81, 256, %s1, [#allocation4]
    $region13: #{tpu_custom_call.1} parent=1 // pred_fallthru
      _
    // Predicated region
    $region14: #{tpu_custom_call.1} parent=1 // pred_check
      _
    $region15: #{tpu_custom_call.1} parent=1 // pred_check_branch
      %85 = sbr.rel (0) target = $region17
    $region16: #{tpu_custom_call.1} parent=1 // pred_region
      %86 = dma.done [#allocation4], 256
    $region17: #{tpu_custom_call.1} parent=1 // pred_fallthru
      _
    %87 = vsyncpa [#allocation3], 1
    %88 = vsyncpa [#allocation4], 1

</llo_original>
